<compile_context>
chip_gen: v6e
topology: v6e:2x2x1
jax: 0.10.0
libtpu: 0.0.40
codegen_flags: <defaults>
</compile_context>

<pallas_src>
import functools
import math

import jax
import jax.numpy as jnp
from jax.experimental import pallas as pl
from jax.experimental.pallas import tpu as pltpu


LANE = 128                     # pad output-feature dims to this (lane-dense stores)
SUBLANE = 8                    # pad contraction dims to this
TM_CAP = 2048                  # aggregation row-tile cap
TK_CAP = 1024                  # aggregation K-tile cap
DEFAULT_DENSE_TILE = 512       # default node tile for the dense kernels
VMEM_LIMIT_BYTES = 48 * 1024 * 1024   # < v7x 64 MiB physical; ample for tiles below


def _round_up(x, m):
    return ((x + m - 1) // m) * m


def _pad2d(x, rows, cols):
    r, c = x.shape
    if r == rows and c == cols:
        return x
    return jnp.pad(x, ((0, rows - r), (0, cols - c)))


def _pick_dense_tile(n, requested=None):
    tile = requested if requested is not None else min(
        DEFAULT_DENSE_TILE, _round_up(n, LANE))
    assert tile % LANE == 0, "node tile must be a multiple of 128"
    return tile


def _choose_gcn_tiles(n, tm=None, tk=None):
    """Row tile tm (parallel axis) and K tile tk for the aggregation."""
    n128 = _round_up(n, LANE)
    if tm is None:
        tm = min(TM_CAP, n128)
        # Keep >= 2 row tiles when possible: the row axis is "parallel" and
        # v7x has 2 TensorCores per chip.
        if n128 >= 2 * LANE:
            tm = min(tm, max(LANE, (n128 // 2) // LANE * LANE))
    if tk is None:
        tk = min(TK_CAP, n128)
    assert tm % LANE == 0 and tk % LANE == 0
    return tm, tk


# ----------------------------------------------------------------------------
# Dense kernel: out = act(x @ W + b), grid over node-row tiles only.
# ----------------------------------------------------------------------------
def _dense_kernel(x_ref, w_ref, b_ref, o_ref, *, relu):
    acc = jnp.dot(x_ref[...], w_ref[...], preferred_element_type=jnp.float32)
    acc = acc + b_ref[...]
    if relu:
        acc = jnp.maximum(acc, 0.0)
    o_ref[...] = acc.astype(o_ref.dtype)


def dense(x, w, b=None, *, relu=False, node_tile=None,
          compute_dtype=jnp.bfloat16, out_dtype=jnp.float32, out_padded=False):
    n, in_f = x.shape
    in_f_w, out_f = w.shape
    assert in_f == in_f_w

    tile = _pick_dense_tile(n, node_tile)
    n_p = _round_up(n, tile)
    in_fp = _round_up(in_f, SUBLANE)
    out_fp = _round_up(out_f, LANE)

    # Cast BEFORE padding (pad the narrow dtype, not f32).
    x_p = _pad2d(x.astype(compute_dtype), n_p, in_fp)
    w_p = _pad2d(w.astype(compute_dtype), in_fp, out_fp)
    b_p = jnp.zeros((1, out_fp), jnp.float32)
    if b is not None:
        b_p = b_p.at[0, :out_f].set(b.astype(jnp.float32))

    grid = (n_p // tile,)
    out_itemsize = jnp.dtype(out_dtype).itemsize
    flops = 2 * n_p * in_fp * out_fp
    bytes_accessed = (x_p.size * x_p.dtype.itemsize
                      + w_p.size * w_p.dtype.itemsize
                      + b_p.size * 4 + n_p * out_fp * out_itemsize)

    out = pl.pallas_call(
        functools.partial(_dense_kernel, relu=relu),
        out_shape=jax.ShapeDtypeStruct((n_p, out_fp), out_dtype),
        grid_spec=pltpu.PrefetchScalarGridSpec(
            num_scalar_prefetch=0,
            grid=grid,
            in_specs=[
                pl.BlockSpec((tile, in_fp), lambda i: (i, 0)),
                pl.BlockSpec((in_fp, out_fp), lambda i: (0, 0)),
                pl.BlockSpec((1, out_fp), lambda i: (0, 0)),
            ],
            out_specs=pl.BlockSpec((tile, out_fp), lambda i: (i, 0)),
        ),
        compiler_params=pltpu.CompilerParams(
            dimension_semantics=("parallel",),
            vmem_limit_bytes=VMEM_LIMIT_BYTES,
        ),
        cost_estimate=pl.CostEstimate(
            flops=flops, transcendentals=0, bytes_accessed=bytes_accessed),
    )(x_p, w_p, b_p)

    if out_padded:
        return out
    return out[:n, :out_f]


# ----------------------------------------------------------------------------
# Two-input dense kernel: out = act(x1 @ W1 + x2 @ W2 + b).
# Replaces concat([x1, x2]) @ W without materializing the concatenation.
# ----------------------------------------------------------------------------
def _dense2_kernel(x1_ref, x2_ref, w1_ref, w2_ref, b_ref, o_ref, *, relu):
    acc = jnp.dot(x1_ref[...], w1_ref[...], preferred_element_type=jnp.float32)
    acc = acc + jnp.dot(x2_ref[...], w2_ref[...],
                        preferred_element_type=jnp.float32)
    acc = acc + b_ref[...]
    if relu:
        acc = jnp.maximum(acc, 0.0)
    o_ref[...] = acc.astype(o_ref.dtype)


def dense2(x1, x2, w1, w2, b=None, *, relu=False, node_tile=None,
           compute_dtype=jnp.bfloat16, out_dtype=jnp.float32, out_padded=False):
    n, in_f1 = x1.shape
    n2, in_f2 = x2.shape
    assert n == n2
    assert w1.shape[0] == in_f1 and w2.shape[0] == in_f2
    assert w1.shape[1] == w2.shape[1]
    out_f = w1.shape[1]

    tile = _pick_dense_tile(n, node_tile)
    n_p = _round_up(n, tile)
    in_f1p = _round_up(in_f1, SUBLANE)
    in_f2p = _round_up(in_f2, SUBLANE)
    out_fp = _round_up(out_f, LANE)

    x1_p = _pad2d(x1.astype(compute_dtype), n_p, in_f1p)
    x2_p = _pad2d(x2.astype(compute_dtype), n_p, in_f2p)
    w1_p = _pad2d(w1.astype(compute_dtype), in_f1p, out_fp)
    w2_p = _pad2d(w2.astype(compute_dtype), in_f2p, out_fp)
    b_p = jnp.zeros((1, out_fp), jnp.float32)
    if b is not None:
        b_p = b_p.at[0, :out_f].set(b.astype(jnp.float32))

    grid = (n_p // tile,)
    out_itemsize = jnp.dtype(out_dtype).itemsize
    flops = 2 * n_p * (in_f1p + in_f2p) * out_fp
    bytes_accessed = ((x1_p.size + x2_p.size + w1_p.size + w2_p.size)
                      * x1_p.dtype.itemsize
                      + b_p.size * 4 + n_p * out_fp * out_itemsize)

    out = pl.pallas_call(
        functools.partial(_dense2_kernel, relu=relu),
        out_shape=jax.ShapeDtypeStruct((n_p, out_fp), out_dtype),
        grid_spec=pltpu.PrefetchScalarGridSpec(
            num_scalar_prefetch=0,
            grid=grid,
            in_specs=[
                pl.BlockSpec((tile, in_f1p), lambda i: (i, 0)),
                pl.BlockSpec((tile, in_f2p), lambda i: (i, 0)),
                pl.BlockSpec((in_f1p, out_fp), lambda i: (0, 0)),
                pl.BlockSpec((in_f2p, out_fp), lambda i: (0, 0)),
                pl.BlockSpec((1, out_fp), lambda i: (0, 0)),
            ],
            out_specs=pl.BlockSpec((tile, out_fp), lambda i: (i, 0)),
        ),
        compiler_params=pltpu.CompilerParams(
            dimension_semantics=("parallel",),
            vmem_limit_bytes=VMEM_LIMIT_BYTES,
        ),
        cost_estimate=pl.CostEstimate(
            flops=flops, transcendentals=0, bytes_accessed=bytes_accessed),
    )(x1_p, x2_p, w1_p, w2_p, b_p)

    if out_padded:
        return out
    return out[:n, :out_f]


# ----------------------------------------------------------------------------
# GCN aggregation kernel: out = act(adj @ support + b), tiled over
# (row tiles "parallel", K tiles "arbitrary") with an f32 VMEM accumulator.
# The accumulator is initialized with the broadcast bias at k == 0.
# ----------------------------------------------------------------------------
def _gcn_agg_kernel(adj_ref, sup_ref, b_ref, o_ref, acc_ref, *, relu):
    k = pl.program_id(1)

    @pl.when(k == 0)
    def _():
        acc_ref[...] = jnp.broadcast_to(b_ref[...], acc_ref.shape)

    acc_ref[...] += jnp.dot(adj_ref[...], sup_ref[...],
                            preferred_element_type=jnp.float32)

    @pl.when(k == pl.num_programs(1) - 1)
    def _():
        out = acc_ref[...]
        if relu:
            out = jnp.maximum(out, 0.0)
        o_ref[...] = out.astype(o_ref.dtype)


def gcn_aggregate(adj_p, support_p, bias, *, n, out_f, tm, tk, relu=False,
                  out_dtype=jnp.bfloat16):
    """adj_p: (n_pr, n_pc) padded compute-dtype adjacency (shared across layers).
    support_p: (n_pc, out_fp) padded compute-dtype support = features @ W."""
    n_pr, n_pc = adj_p.shape
    n_pc2, out_fp = support_p.shape
    assert n_pc == n_pc2
    assert n_pr % tm == 0 and n_pc % tk == 0 and out_fp % LANE == 0

    b_p = jnp.zeros((1, out_fp), jnp.float32)
    if bias is not None:
        b_p = b_p.at[0, :out_f].set(bias.astype(jnp.float32))

    grid = (n_pr // tm, n_pc // tk)
    out_itemsize = jnp.dtype(out_dtype).itemsize
    flops = 2 * n_pr * n_pc * out_fp
    bytes_accessed = (adj_p.size * adj_p.dtype.itemsize
                      # support is re-read once per row tile:
                      + support_p.size * support_p.dtype.itemsize * (n_pr // tm)
                      + b_p.size * 4
                      + n_pr * out_fp * out_itemsize)

    out = pl.pallas_call(
        functools.partial(_gcn_agg_kernel, relu=relu),
        out_shape=jax.ShapeDtypeStruct((n_pr, out_fp), out_dtype),
        grid_spec=pltpu.PrefetchScalarGridSpec(
            num_scalar_prefetch=0,
            grid=grid,
            in_specs=[
                pl.BlockSpec((tm, tk), lambda i, k: (i, k)),
                pl.BlockSpec((tk, out_fp), lambda i, k: (k, 0)),
                pl.BlockSpec((1, out_fp), lambda i, k: (0, 0)),
            ],
            out_specs=pl.BlockSpec((tm, out_fp), lambda i, k: (i, 0)),
            scratch_shapes=[pltpu.VMEM((tm, out_fp), jnp.float32)],
        ),
        compiler_params=pltpu.CompilerParams(
            dimension_semantics=("parallel", "arbitrary"),
            vmem_limit_bytes=VMEM_LIMIT_BYTES,
        ),
        cost_estimate=pl.CostEstimate(
            flops=flops, transcendentals=0, bytes_accessed=bytes_accessed),
    )(adj_p, support_p, b_p)

    return out[:n, :out_f]


def graph_convolution(features, adj, weights, bias=None, *, relu=False,
                      tm=None, tk=None, compute_dtype=jnp.bfloat16,
                      out_dtype=jnp.float32):
    """Standalone GraphConvolution: adj @ (features @ W) (+ bias) (+ optional relu)."""
    n, in_f = features.shape
    assert adj.shape == (n, n)
    assert weights.shape[0] == in_f
    out_f = weights.shape[1]

    tm_, tk_ = _choose_gcn_tiles(n, tm, tk)
    n_pr, n_pc = _round_up(n, tm_), _round_up(n, tk_)

    adj_p = _pad2d(adj.astype(compute_dtype), n_pr, n_pc)   # cast, then pad
    support_p = dense(features, weights, None, relu=False, node_tile=tk_,
                      compute_dtype=compute_dtype, out_dtype=compute_dtype,
                      out_padded=True)                       # (n_pc, out_fp) bf16
    return gcn_aggregate(adj_p, support_p, bias, n=n, out_f=out_f,
                         tm=tm_, tk=tk_, relu=relu, out_dtype=out_dtype)


# ----------------------------------------------------------------------------
# STGNN parameters + forward pass (eval mode).
# ----------------------------------------------------------------------------
def init_stgnn_params(key, temp_feat=7, in_feat=64, hidden_feat=32,
                      out_feat=32, pred_feat=1, bias=False):
    ks = jax.random.split(key, 8)

    def uni(k, shape, std):
        return jax.random.uniform(k, shape, jnp.float32, minval=-std, maxval=std)

    params = {}
    s1 = 1.0 / math.sqrt(temp_feat)
    params["w_lin1"] = uni(ks[0], (temp_feat, in_feat), s1)
    params["b_lin1"] = uni(ks[1], (in_feat,), s1)
    sg1 = 1.0 / math.sqrt(hidden_feat)
    params["w_gc1"] = uni(ks[2], (in_feat, hidden_feat), sg1)
    params["b_gc1"] = uni(ks[3], (hidden_feat,), sg1) if bias else None
    sg2 = 1.0 / math.sqrt(out_feat)
    params["w_gc2"] = uni(ks[4], (hidden_feat + in_feat, out_feat), sg2)
    params["b_gc2"] = uni(ks[5], (out_feat,), sg2) if bias else None
    s2 = 1.0 / math.sqrt(out_feat + in_feat)
    params["w_lin2"] = uni(ks[6], (out_feat + in_feat, pred_feat), s2)
    params["b_lin2"] = uni(ks[7], (pred_feat,), s2)
    return params


def stgnn_forward(params, temporal_features, adj, *, tm=None, tk=None,
                  compute_dtype=jnp.bfloat16):
    # Dropout with drop_rate=0 (module default) / eval mode is the identity.
    # TODO(synk): training-mode dropout (drop_rate > 0) is not implemented here.
    n = temporal_features.shape[0]
    assert adj.shape == (n, n)
    hidden_feat = params["w_gc1"].shape[1]
    out_feat = params["w_gc2"].shape[1]

    tm_, tk_ = _choose_gcn_tiles(n, tm, tk)
    n_pr, n_pc = _round_up(n, tm_), _round_up(n, tk_)

    # Adjacency: cast to compute dtype BEFORE padding, pad exactly once, and
    # share the padded bf16 matrix across both GCN layers (dominant n^2 term).
    adj_p = _pad2d(adj.astype(compute_dtype), n_pr, n_pc)

    # h0 = relu(linear1(x))  — emitted in bf16 (only consumed by matmuls).
    h0 = dense(temporal_features, params["w_lin1"], params["b_lin1"],
               relu=True, node_tile=tk_, compute_dtype=compute_dtype,
               out_dtype=compute_dtype)

    # Layer 1: support1 = h0 @ W_gc1 (bf16, padded to (n_pc, out_fp)),
    # then h1 = relu(adj @ support1 + b_gc1).
    support1 = dense(h0, params["w_gc1"], None, relu=False, node_tile=tk_,
                     compute_dtype=compute_dtype, out_dtype=compute_dtype,
                     out_padded=True)
    h1 = gcn_aggregate(adj_p, support1, params["b_gc1"], n=n, out_f=hidden_feat,
                       tm=tm_, tk=tk_, relu=True, out_dtype=compute_dtype)

    # Layer 2: concat([h1, h0]) @ W_gc2 == h1 @ W_top + h0 @ W_bot (no concat).
    w_gc2_top = params["w_gc2"][:hidden_feat]
    w_gc2_bot = params["w_gc2"][hidden_feat:]
    support2 = dense2(h1, h0, w_gc2_top, w_gc2_bot, None, relu=False,
                      node_tile=tk_, compute_dtype=compute_dtype,
                      out_dtype=compute_dtype, out_padded=True)
    h2 = gcn_aggregate(adj_p, support2, params["b_gc2"], n=n, out_f=out_feat,
                       tm=tm_, tk=tk_, relu=True, out_dtype=compute_dtype)

    # linear2: concat([h2, h0]) @ W_lin2 + b == h2 @ W_top + h0 @ W_bot + b.
    w_lin2_top = params["w_lin2"][:out_feat]
    w_lin2_bot = params["w_lin2"][out_feat:]
    out = dense2(h2, h0, w_lin2_top, w_lin2_bot, params["b_lin2"], relu=False,
                 node_tile=tk_, compute_dtype=compute_dtype,
                 out_dtype=jnp.float32)
    return out


# ----------------------------------------------------------------------------
# Pure-JAX reference with matching precision choices (bf16 matmul operands,
# f32 accumulation) so the check verifies kernel correctness, not dtype policy.
# ----------------------------------------------------------------------------
def stgnn_reference(params, temporal_features, adj, *, compute_dtype=jnp.bfloat16):
    cd = compute_dtype

    def mm(a, b):
        return jnp.dot(a.astype(cd), b.astype(cd),
                       preferred_element_type=jnp.float32)

    def gcn(feat, w, b, relu):
        support = mm(feat, w)
        out = mm(adj, support)
        if b is not None:
            out = out + b
        if relu:
            out = jnp.maximum(out, 0.0)
        return out

    h0 = jnp.maximum(mm(temporal_features, params["w_lin1"]) + params["b_lin1"], 0.0)
    h1 = gcn(h0, params["w_gc1"], params["b_gc1"], True)
    h1c = jnp.concatenate([h1, h0], axis=1)
    h2 = gcn(h1c, params["w_gc2"], params["b_gc2"], True)
    h2c = jnp.concatenate([h2, h0], axis=1)
    return mm(h2c, params["w_lin2"]) + params["b_lin2"]


if __name__ == "__main__":
    n_nodes = 200                      # not a tile multiple -> exercises padding
    temp_feat, in_feat, hidden_feat, out_feat, pred_feat = 7, 64, 32, 32, 1

    key = jax.random.PRNGKey(0)
    k_feat, k_adj, k_par = jax.random.split(key, 3)

    temporal_features = jax.random.normal(
        k_feat, (n_nodes, temp_feat), jnp.float32)

    a = jax.random.uniform(k_adj, (n_nodes, n_nodes), jnp.float32)
    a = (a + a.T) * 0.5 + jnp.eye(n_nodes, dtype=jnp.float32)
    adj = a / jnp.sum(a, axis=1, keepdims=True)     # normalized dense adjacency

    params = init_stgnn_params(k_par, temp_feat, in_feat, hidden_feat,
                               out_feat, pred_feat, bias=True)

    # Small explicit tiles so the demo exercises the multi-step (row, K) grid,
    # the accumulator init/finalize path, and the ragged n_nodes -> padded path.
    out = stgnn_forward(params, temporal_features, adj, tm=128, tk=128)
    out = jax.block_until_ready(out)
    assert out.shape == (n_nodes, pred_feat)

    ref = jax.block_until_ready(stgnn_reference(params, temporal_features, adj))
    assert jnp.allclose(out, ref, atol=2e-3, rtol=2e-3), \
        float(jnp.max(jnp.abs(out - ref)))

    # Standalone GraphConvolution, bias=None path (module default), auto tiles.
    w_gc = jax.random.uniform(jax.random.PRNGKey(1), (temp_feat, hidden_feat),
                              jnp.float32, minval=-0.2, maxval=0.2)
    gc_out = jax.block_until_ready(
        graph_convolution(temporal_features, adj, w_gc))
    cd = jnp.bfloat16
    sup_ref = jnp.dot(temporal_features.astype(cd), w_gc.astype(cd),
                      preferred_element_type=jnp.float32)
    gc_ref = jnp.dot(adj.astype(cd), sup_ref.astype(cd),
                     preferred_element_type=jnp.float32)
    assert gc_out.shape == (n_nodes, hidden_feat)
    assert jnp.allclose(gc_out, gc_ref, atol=2e-3, rtol=2e-3), \
        float(jnp.max(jnp.abs(gc_out - gc_ref)))

    print("KERNEL_OK")
</pallas_src>

<mosaic_0001>
module attributes {stable_mosaic.version = 11 : i64} {
  func.func @_dense_kernel(%arg0: i32, %arg1: memref<128x8xbf16, #tpu.memory_space<vmem>>, %arg2: memref<8x128xbf16, #tpu.memory_space<vmem>>, %arg3: memref<1x128xf32, #tpu.memory_space<vmem>>, %arg4: memref<128x128xbf16, #tpu.memory_space<vmem>>) attributes {dimension_semantics = [#tpu.dimension_semantics<parallel>], iteration_bounds = array<i64: 2>, scalar_prefetch = 0 : i64, scratch_operands = 0 : i64, tpu.core_type = #tpu.core_type<tc>, window_params = [{transform_indices = @transform_0, window_bounds = array<i64: 128, 8>}, {pipeline_mode = #tpu.pipeline_mode<synchronous>, transform_indices = @transform_1, window_bounds = array<i64: 8, 128>}, {pipeline_mode = #tpu.pipeline_mode<synchronous>, transform_indices = @transform_2, window_bounds = array<i64: 1, 128>}, {transform_indices = @transform_3, window_bounds = array<i64: 128, 128>}]} {
    %c0 = arith.constant 0 : index
    %c0_0 = arith.constant 0 : index
    %0 = vector.load %arg1[%c0, %c0_0] : memref<128x8xbf16, #tpu.memory_space<vmem>>, vector<128x8xbf16>
    %c0_1 = arith.constant 0 : index
    %c0_2 = arith.constant 0 : index
    %1 = vector.load %arg2[%c0_1, %c0_2] : memref<8x128xbf16, #tpu.memory_space<vmem>>, vector<8x128xbf16>
    %cst = arith.constant dense<0.000000e+00> : vector<128x128xf32>
    %2 = tpu.matmul %0, %1, %cst {dimension_numbers = #tpu.dot_dimension_numbers<[1], [0], [0], [1], [0, 0, 1, 1], [], []>} : vector<128x8xbf16>, vector<8x128xbf16>, vector<128x128xf32> -> vector<128x128xf32>
    %c0_3 = arith.constant 0 : index
    %c0_4 = arith.constant 0 : index
    %3 = vector.load %arg3[%c0_3, %c0_4] : memref<1x128xf32, #tpu.memory_space<vmem>>, vector<1x128xf32>
    %4 = vector.broadcast %3 : vector<1x128xf32> to vector<128x128xf32>
    %5 = arith.addf %2, %4 : vector<128x128xf32>
    %cst_5 = arith.constant 0.000000e+00 : f32
    %6 = vector.broadcast %cst_5 : f32 to vector<128x128xf32>
    %7 = arith.maximumf %5, %6 : vector<128x128xf32>
    %8 = arith.truncf %7 : vector<128x128xf32> to vector<128x128xbf16>
    %c0_6 = arith.constant 0 : index
    %c0_7 = arith.constant 0 : index
    %9 = vector.load %arg4[%c0_6, %c0_7] : memref<128x128xbf16, #tpu.memory_space<vmem>>, vector<128x128xbf16>
    tpu.vector_store %arg4[%c0_6, %c0_7], %8 {strides = array<i32>} : memref<128x128xbf16, #tpu.memory_space<vmem>>, vector<128x128xbf16>,
    return
  }
  func.func @transform_0(%arg0: i32) -> (i32, i32) {
    %c0_i32 = arith.constant 0 : i32
    %c0_i32_0 = arith.constant 0 : i32
    return %arg0, %c0_i32 : i32, i32
  }
  func.func @transform_1(%arg0: i32) -> (i32, i32) {
    %c0_i32 = arith.constant 0 : i32
    %c0_i32_0 = arith.constant 0 : i32
    %c0_i32_1 = arith.constant 0 : i32
    return %c0_i32, %c0_i32_0 : i32, i32
  }
  func.func @transform_2(%arg0: i32) -> (i32, i32) {
    %c0_i32 = arith.constant 0 : i32
    %c0_i32_0 = arith.constant 0 : i32
    %c0_i32_1 = arith.constant 0 : i32
    return %c0_i32, %c0_i32_0 : i32, i32
  }
  func.func @transform_3(%arg0: i32) -> (i32, i32) {
    %c0_i32 = arith.constant 0 : i32
    %c0_i32_0 = arith.constant 0 : i32
    return %arg0, %c0_i32 : i32, i32
  }
}

</mosaic_0001>

<llo_original>
// kernel: tpu_custom_call.1
$region0: #{tpu_custom_call.1}
  #allocation0 [shape = 'u32[]', space=smem, size = 0x4, offset = 0x4, fixed_abs, tag = 'smem constant byte address 0x4 - core index']
  #allocation1 [shape = 'u32[144,128]{1,0:T(1,128)}', space=vmem, size = 0x12000, scoped, tag = 'internal scratch']
  %s0 = inlined_call_operand.vmem [shape: bf16[256,8], index: 0, kind: input, shape index: {}]
  %s1 = inlined_call_operand.vmem [shape: bf16[8,128], index: 1, kind: input, shape index: {}]
  %s2 = inlined_call_operand.vmem [shape: f32[1,128], index: 2, kind: input, shape index: {}]
  %s3 = inlined_call_operand.hbm [shape: bf16[256,128], index: 3, kind: output, shape index: {}]
  %s4 = sld [smem:[#allocation0]]
  $region45: #{tpu_custom_call.1} parent=0
    _
  %s6 = ssub.s32 1, %s4
  %s7 = scalar_select 0, %s6, %s4
  $region1: #{tpu_custom_call.1} parent=0
    #allocation2 [shape = 'u8[65536]{0}', space=vmem, size = 0x10000, scoped, tag = 'output window, operand 0']
    #allocation3 [shape = 's32[2]{0}', space=sflag, size = 0x8, scoped, tag = 'scoped memory for tpu_custom_call.1']
    %8 = vsyncpa [#allocation3], 0
    %s9 = scalar_lea.sflag [#allocation3], 1
    %10 = vsyncpa %s9, 0
    loop: start=0, step=1, limit=4
    $region2: #{tpu_custom_call.1} parent=1 // loop_pre_header
      _
    $region3: #{tpu_custom_call.1} parent=1 // loop_header
      %s12 = sphi 0, %s16
      %p13 = scmp.ge.s32.totalorder %s12, 4
      %s22 = sphi 0, %s24
      %s25 = sphi 0, %s22
      %s26 = sphi 0, %s25
      %s42 = sphi 0, %s26
      %s46 = sphi 0, %s46
      %s48 = sphi 0, %s46
      %s49 = sphi 0, %s48
      %s63 = sphi 0, %s49
      %s67 = sphi 0, %s67
      %s69 = sphi 0, %s67
      %s70 = sphi 0, %s69
      %s84 = sphi 0, %s70
      %s90 = sphi 0, %s92
      %s93 = sphi 0, %s90
      %s94 = sphi 0, %s93
      %s110 = sphi 0, %s94
    $region4: #{tpu_custom_call.1} parent=1 // loop_header_branch
      %15 = sbr.rel (%p13) target = $region8
    $region5: #{tpu_custom_call.1} parent=1 // loop_body
      %s17 = ssub.s32 %s12, 1
      %s18 = ssub.s32 %s12, 2
      %s19 = sadd.s32 %s12, 1
      %s20 = ssub.s32 %s12, %s19
      %p21 = scmp.eq.s32.totalorder %s20, 0
      %s23 = sadd.s32 %s22, 1
      %s24 = scalar_select %p21, %s22, %s23
      %p27 = pneg %p21
      %p28 = scmp.eq.s32.totalorder %s12, 1
      %p29 = por %p27, %p28
      %p30 = scmp.ne.s32.totalorder %s22, %s25
      %p31 = scmp.eq.s32.totalorder %s12, 0
      %p32 = por %p30, %p31
      %p33 = scmp.ne.s32.totalorder %s22, %s25
      %p34 = scmp.eq.s32.totalorder %s17, 1
      %p35 = por %p33, %p34
      %p36 = scmp.ne.s32.totalorder %s25, %s26
      %p37 = scmp.eq.s32.totalorder %s17, 0
      %p38 = por %p36, %p37
      %p39 = scmp.ne.s32.totalorder %s25, %s26
      %p40 = scmp.eq.s32.totalorder %s18, 1
      %p41 = por %p39, %p40
      %p43 = scmp.ne.s32.totalorder %s26, %s42
      %p44 = scmp.eq.s32.totalorder %s18, 0
      %p45 = por %p43, %p44
      %s47 = sadd.s32 %s46, 1
      %p50 = scmp.eq.s32.totalorder %s12, 1
      %p51 = scmp.ne.s32.totalorder %s46, %s48
      %p52 = scmp.eq.s32.totalorder %s12, 0
      %p53 = por %p51, %p52
      %p54 = scmp.ne.s32.totalorder %s46, %s48
      %p55 = scmp.eq.s32.totalorder %s17, 1
      %p56 = por %p54, %p55
      %p57 = scmp.ne.s32.totalorder %s48, %s49
      %p58 = scmp.eq.s32.totalorder %s17, 0
      %p59 = por %p57, %p58
      %p60 = scmp.ne.s32.totalorder %s48, %s49
      %p61 = scmp.eq.s32.totalorder %s18, 1
      %p62 = por %p60, %p61
      %p64 = scmp.ne.s32.totalorder %s49, %s63
      %p65 = scmp.eq.s32.totalorder %s18, 0
      %p66 = por %p64, %p65
      %s68 = sadd.s32 %s67, 1
      %p71 = scmp.eq.s32.totalorder %s12, 1
      %p72 = scmp.ne.s32.totalorder %s67, %s69
      %p73 = scmp.eq.s32.totalorder %s12, 0
      %p74 = por %p72, %p73
      %p75 = scmp.ne.s32.totalorder %s67, %s69
      %p76 = scmp.eq.s32.totalorder %s17, 1
      %p77 = por %p75, %p76
      %p78 = scmp.ne.s32.totalorder %s69, %s70
      %p79 = scmp.eq.s32.totalorder %s17, 0
      %p80 = por %p78, %p79
      %p81 = scmp.ne.s32.totalorder %s69, %s70
      %p82 = scmp.eq.s32.totalorder %s18, 1
      %p83 = por %p81, %p82
      %p85 = scmp.ne.s32.totalorder %s70, %s84
      %p86 = scmp.eq.s32.totalorder %s18, 0
      %p87 = por %p85, %p86
      %s88 = ssub.s32 %s12, %s19
      %p89 = scmp.eq.s32.totalorder %s88, 0
      %s91 = sadd.s32 %s90, 1
      %s92 = scalar_select %p89, %s90, %s91
      %p95 = pneg %p89
      %p96 = scmp.eq.s32.totalorder %s12, 1
      %p97 = por %p95, %p96
      %p98 = scmp.ne.s32.totalorder %s90, %s93
      %p99 = scmp.eq.s32.totalorder %s12, 0
      %p100 = por %p98, %p99
      %p101 = scmp.ne.s32.totalorder %s90, %s93
      %p102 = scmp.eq.s32.totalorder %s17, 1
      %p103 = por %p101, %p102
      %p104 = scmp.ne.s32.totalorder %s93, %s94
      %p105 = scmp.eq.s32.totalorder %s17, 0
      %p106 = por %p104, %p105
      %p107 = scmp.ne.s32.totalorder %s93, %s94
      %p108 = scmp.eq.s32.totalorder %s18, 1
      %p109 = por %p107, %p108
      %p111 = scmp.ne.s32.totalorder %s94, %s110
      %p112 = scmp.eq.s32.totalorder %s18, 0
      %p113 = por %p111, %p112
      %p114 = scmp.le.s32.totalorder 1, %s12
      %p115 = scmp.lt.s32.totalorder %s12, 3
      %p116 = pnand %p114, %p115
      %p117 = pneg %p116
      // Predicated region
      $region9: #{tpu_custom_call.1} parent=5 // pred_check
        _
      $region10: #{tpu_custom_call.1} parent=5 // pred_check_branch
        %119 = sbr.rel (%p116) target = $region12
      $region11: #{tpu_custom_call.1} parent=5 // pred_region
        %s120 = ssub.s32 %s12, 1
        // Predicated region
        $region13: #{tpu_custom_call.1} parent=11 // pred_check
          %p121 = pneg %p59
        $region14: #{tpu_custom_call.1} parent=11 // pred_check_branch
          %123 = sbr.rel (%p121) target = $region16
        $region15: #{tpu_custom_call.1} parent=11 // pred_region
          _
        $region16: #{tpu_custom_call.1} parent=11 // pred_fallthru
          _
        // Predicated region
        $region17: #{tpu_custom_call.1} parent=11 // pred_check
          %p124 = pneg %p80
        $region18: #{tpu_custom_call.1} parent=11 // pred_check_branch
          %126 = sbr.rel (%p124) target = $region20
        $region19: #{tpu_custom_call.1} parent=11 // pred_region
          _
        $region20: #{tpu_custom_call.1} parent=11 // pred_fallthru
          _
      $region12: #{tpu_custom_call.1} parent=5 // pred_fallthru
        _
      %p127 = scmp.lt.s32.totalorder %s12, 2
      // Predicated region
      $region21: #{tpu_custom_call.1} parent=5 // pred_check
        %p128 = pneg %p127
      $region22: #{tpu_custom_call.1} parent=5 // pred_check_branch
        %130 = sbr.rel (%p128) target = $region24
      $region23: #{tpu_custom_call.1} parent=5 // pred_region
        // Predicated region
        $region25: #{tpu_custom_call.1} parent=23 // pred_check
          %p131 = pneg %p32
        $region26: #{tpu_custom_call.1} parent=23 // pred_check_branch
          %133 = sbr.rel (%p131) target = $region28
        $region27: #{tpu_custom_call.1} parent=23 // pred_region
          %s134 = smul.u32 16, %s12
          %p135 = scmp.lt.s32.totalorder %s134, 31
          %s136 = scalar_select %p135, %s134, 31
          %s137 = smul.addr %s136, 4
          %s138 = scalar_lea.vmem %s0, %s137
          %s139 = smul.u32 16, %s12
        $region28: #{tpu_custom_call.1} parent=23 // pred_fallthru
          _
      $region24: #{tpu_custom_call.1} parent=5 // pred_fallthru
        _
      %p140 = scmp.le.s32.totalorder 1, %s12
      %p141 = scmp.lt.s32.totalorder %s12, 3
      %p142 = pnand %p140, %p141
      %p143 = pneg %p142
      // Predicated region
      $region29: #{tpu_custom_call.1} parent=5 // pred_check
        _
      $region30: #{tpu_custom_call.1} parent=5 // pred_check_branch
        %145 = sbr.rel (%p142) target = $region32
      $region31: #{tpu_custom_call.1} parent=5 // pred_region
        %s146 = ssub.s32 %s12, 1
        %s147 = smul.u32 16, %s17
        %p148 = scmp.lt.s32.totalorder %s147, 31
        %s149 = scalar_select %p148, %s147, 31
        %s150 = smul.addr %s149, 4
        %s151 = scalar_lea.vmem %s0, %s150
        %p152 = pneg %p38
        %p153 = pneg %p35
        %p154 = pneg %p59
        %p155 = pneg %p56
        %p156 = pneg %p80
        %p157 = pneg %p77
        %p158 = pneg %p106
        %p159 = pneg %p103
        %s160 = sand.u32 %s93, 1
        %s161 = scalar_lea.sflag [#allocation3], %s160
        %s162 = sand.u32 %s93, 1
        %s163 = smul.addr %s162, 64
        %s164 = scalar_lea.vmem [#allocation2], %s163
        %s165 = smul.u32 16, %s17
        %p166 = scmp.lt.s32.totalorder %s165, 31
        %s167 = scalar_select %p166, %s165, 31
        %s168 = smul.addr %s167, 4
        %s169 = scalar_lea.vmem %s0, %s168
        %s170 = smul.u32 16, %s17
        %s171 = smul.u32 16, %s17
        %v173 = vld [vmem:[%s169] sm:$0xf]
        %v174 = vld [vmem:[%s169 + $0x4] sm:$0xf]
        %v175 = vld [vmem:[%s169 + $0x8] sm:$0xf]
        %v176 = vld [vmem:[%s169 + $0xc] sm:$0xf]
        %v177 = vld [vmem:[%s169 + $0x10] sm:$0xf]
        %v178 = vld [vmem:[%s169 + $0x14] sm:$0xf]
        %v179 = vld [vmem:[%s169 + $0x18] sm:$0xf]
        %v180 = vld [vmem:[%s169 + $0x1c] sm:$0xf]
        %v181 = vld [vmem:[%s169 + $0x20] sm:$0xf]
        %v182 = vld [vmem:[%s169 + $0x24] sm:$0xf]
        %v183 = vld [vmem:[%s169 + $0x28] sm:$0xf]
        %v184 = vld [vmem:[%s169 + $0x2c] sm:$0xf]
        %v185 = vld [vmem:[%s169 + $0x30] sm:$0xf]
        %v186 = vld [vmem:[%s169 + $0x34] sm:$0xf]
        %v187 = vld [vmem:[%s169 + $0x38] sm:$0xf]
        %v188 = vld [vmem:[%s169 + $0x3c] sm:$0xf]
        %v189 = vld [vmem:[%s1] sm:$0xf]
        %v190 = vld [vmem:[%s2] sm:$0x1]
        %v192 = vlaneseq
        %v193 = vshrl.u32 %v192, 7
        %v194 = vsub.s32 0, %v193
        %v195 = vrot.slane %v190, %v194
        %v213 = vunpack.c.l.b16 %v173
        %v214 = vunpack.c.l.b16 %v174
        %v215 = vunpack.c.l.b16 %v175
        %v216 = vunpack.c.l.b16 %v176
        %v217 = vunpack.c.l.b16 %v177
        %v218 = vunpack.c.l.b16 %v178
        %v219 = vunpack.c.l.b16 %v179
        %v220 = vunpack.c.l.b16 %v180
        %v221 = vunpack.c.l.b16 %v181
        %v222 = vunpack.c.l.b16 %v182
        %v223 = vunpack.c.l.b16 %v183
        %v224 = vunpack.c.l.b16 %v184
        %v225 = vunpack.c.l.b16 %v185
        %v226 = vunpack.c.l.b16 %v186
        %v227 = vunpack.c.l.b16 %v187
        %v228 = vunpack.c.l.b16 %v188
        %v229 = vpack.c.b16 %v214, %v213
        %v230 = vpack.c.b16 %v216, %v215
        %v231 = vpack.c.b16 %v218, %v217
        %v232 = vpack.c.b16 %v220, %v219
        %v233 = vpack.c.b16 %v222, %v221
        %v234 = vpack.c.b16 %v224, %v223
        %v235 = vpack.c.b16 %v226, %v225
        %v236 = vpack.c.b16 %v228, %v227
        %vm237 = vcmask 64512
        %v239 = vsel %vm237, %v229, 0
        %v242 = vsel %vm237, %v230, 0
        %v245 = vsel %vm237, %v231, 0
        %v248 = vsel %vm237, %v232, 0
        %v251 = vsel %vm237, %v233, 0
        %v254 = vsel %vm237, %v234, 0
        %v257 = vsel %vm237, %v235, 0
        %v260 = vsel %vm237, %v236, 0
        %vm262 = vcmask 1043456
        %v264 = vsel %vm262, %v189, 0
        %266 = vmatprep.subr.bf16.mxu0 0
        %267 = vmatpush1.bf16.msra.mxu0 0
        %268 = vmatprep.subr.bf16.mxu0 0
        %269 = vmatpush1.bf16.msra.mxu0 0
        %270 = vmatprep.subr.bf16.mxu0 0
        %271 = vmatpush1.bf16.msra.mxu0 0
        %272 = vmatprep.subr.bf16.mxu0 0
        %273 = vmatpush1.bf16.msra.mxu0 0
        %274 = vmatprep.subr.bf16.mxu0 0
        %275 = vmatpush1.bf16.msra.mxu0 0
        %276 = vmatprep.subr.bf16.mxu0 0
        %277 = vmatpush1.bf16.msra.mxu0 0
        %278 = vmatprep.subr.bf16.mxu0 0
        %279 = vmatpush1.bf16.msra.mxu0 0
        %280 = vmatprep.subr.bf16.mxu0 0
        %281 = vmatpush1.bf16.msra.mxu0 %v264
        %282 = vmatprep.subr.bf16.mxu0 0
        %283 = vmatpush2.bf16.msra.mxu0 0
        %284 = vmatprep.subr.bf16.mxu0 0
        %285 = vmatpush2.bf16.msra.mxu0 0
        %286 = vmatprep.subr.bf16.mxu0 0
        %287 = vmatpush2.bf16.msra.mxu0 0
        %288 = vmatprep.subr.bf16.mxu0 0
        %289 = vmatpush2.bf16.msra.mxu0 0
        %290 = vmatprep.subr.bf16.mxu0 0
        %291 = vmatpush2.bf16.msra.mxu0 0
        %292 = vmatprep.subr.bf16.mxu0 0
        %293 = vmatpush2.bf16.msra.mxu0 0
        %294 = vmatprep.subr.bf16.mxu0 0
        %295 = vmatpush2.bf16.msra.mxu0 0
        %296 = vmatprep.subr.bf16.mxu0 0
        %297 = vmatpush2.bf16.msra.mxu0 0
        %298 = vmatprep.mubr.bf16.mxu0 0
        %299 = vmatmul.mubr.bf16.gmra.mxu0 %v239
        %v300 = vpop.f32.mrf.mxu0
        %v301 = vadd.f32 %v195, %v300
        %v302 = vpop.f32.mrf.mxu0
        %v303 = vpop.f32.mrf.mxu0
        %v304 = vadd.f32 %v195, %v303
        %v305 = vpop.f32.mrf.mxu0
        %306 = vmatprep.mubr.bf16.mxu0 0
        %307 = vmatmul.mubr.bf16.gmra.mxu0 %v242
        %v308 = vpop.f32.mrf.mxu0
        %v309 = vadd.f32 %v195, %v308
        %v310 = vpop.f32.mrf.mxu0
        %v311 = vpop.f32.mrf.mxu0
        %v312 = vadd.f32 %v195, %v311
        %v313 = vpop.f32.mrf.mxu0
        %314 = vmatprep.mubr.bf16.mxu0 0
        %315 = vmatmul.mubr.bf16.gmra.mxu0 %v245
        %v316 = vpop.f32.mrf.mxu0
        %v317 = vadd.f32 %v195, %v316
        %v318 = vpop.f32.mrf.mxu0
        %v319 = vpop.f32.mrf.mxu0
        %v320 = vadd.f32 %v195, %v319
        %v321 = vpop.f32.mrf.mxu0
        %322 = vmatprep.mubr.bf16.mxu0 0
        %323 = vmatmul.mubr.bf16.gmra.mxu0 %v248
        %v324 = vpop.f32.mrf.mxu0
        %v325 = vadd.f32 %v195, %v324
        %v326 = vpop.f32.mrf.mxu0
        %v327 = vpop.f32.mrf.mxu0
        %v328 = vadd.f32 %v195, %v327
        %v329 = vpop.f32.mrf.mxu0
        %330 = vmatprep.mubr.bf16.mxu0 0
        %331 = vmatmul.mubr.bf16.gmra.mxu0 %v251
        %v332 = vpop.f32.mrf.mxu0
        %v333 = vadd.f32 %v195, %v332
        %v334 = vpop.f32.mrf.mxu0
        %v335 = vpop.f32.mrf.mxu0
        %v336 = vadd.f32 %v195, %v335
        %v337 = vpop.f32.mrf.mxu0
        %338 = vmatprep.mubr.bf16.mxu0 0
        %339 = vmatmul.mubr.bf16.gmra.mxu0 %v254
        %v340 = vpop.f32.mrf.mxu0
        %v341 = vadd.f32 %v195, %v340
        %v342 = vpop.f32.mrf.mxu0
        %v343 = vpop.f32.mrf.mxu0
        %v344 = vadd.f32 %v195, %v343
        %v345 = vpop.f32.mrf.mxu0
        %346 = vmatprep.mubr.bf16.mxu0 0
        %347 = vmatmul.mubr.bf16.gmra.mxu0 %v257
        %v348 = vpop.f32.mrf.mxu0
        %v349 = vadd.f32 %v195, %v348
        %v350 = vpop.f32.mrf.mxu0
        %v351 = vpop.f32.mrf.mxu0
        %v352 = vadd.f32 %v195, %v351
        %v353 = vpop.f32.mrf.mxu0
        %354 = vmatprep.mubr.bf16.mxu0 0
        %355 = vmatmul.mubr.bf16.gmra.mxu0 %v260
        %v356 = vpop.f32.mrf.mxu0
        %v357 = vadd.f32 %v195, %v356
        %v358 = vpop.f32.mrf.mxu0
        %v359 = vpop.f32.mrf.mxu0
        %v360 = vadd.f32 %v195, %v359
        %v361 = vpop.f32.mrf.mxu0
        %362 = vdwg.mxu0
        %v363 = vmax.f32 %v301, 0.0
        %v364 = vmax.f32 %v304, 0.0
        %v365 = vmax.f32 %v309, 0.0
        %v366 = vmax.f32 %v312, 0.0
        %v367 = vmax.f32 %v317, 0.0
        %v368 = vmax.f32 %v320, 0.0
        %v369 = vmax.f32 %v325, 0.0
        %v370 = vmax.f32 %v328, 0.0
        %v371 = vmax.f32 %v333, 0.0
        %v372 = vmax.f32 %v336, 0.0
        %v373 = vmax.f32 %v341, 0.0
        %v374 = vmax.f32 %v344, 0.0
        %v375 = vmax.f32 %v349, 0.0
        %v376 = vmax.f32 %v352, 0.0
        %v377 = vmax.f32 %v357, 0.0
        %v378 = vmax.f32 %v360, 0.0
        %v379 = vpack.c.bf16 %v364, %v363
        %v380 = vpack.c.bf16 %v366, %v365
        %v381 = vpack.c.bf16 %v368, %v367
        %v382 = vpack.c.bf16 %v370, %v369
        %v383 = vpack.c.bf16 %v372, %v371
        %v384 = vpack.c.bf16 %v374, %v373
        %v385 = vpack.c.bf16 %v376, %v375
        %v386 = vpack.c.bf16 %v378, %v377
        %v395 = vunpack.c.l.b16 %v379
        %v396 = vunpack.c.h.b16 %v379
        %v397 = vunpack.c.l.b16 %v380
        %v398 = vunpack.c.h.b16 %v380
        %v399 = vunpack.c.l.b16 %v381
        %v400 = vunpack.c.h.b16 %v381
        %v401 = vunpack.c.l.b16 %v382
        %v402 = vunpack.c.h.b16 %v382
        %v403 = vunpack.c.l.b16 %v383
        %v404 = vunpack.c.h.b16 %v383
        %v405 = vunpack.c.l.b16 %v384
        %v406 = vunpack.c.h.b16 %v384
        %v407 = vunpack.c.l.b16 %v385
        %v408 = vunpack.c.h.b16 %v385
        %v409 = vunpack.c.l.b16 %v386
        %v410 = vunpack.c.h.b16 %v386
        %v411 = vpack.c.b16 %v395, %v395
        %v412 = vpack.c.b16 %v396, %v396
        %v413 = vpack.c.b16 %v397, %v397
        %v414 = vpack.c.b16 %v398, %v398
        %v415 = vpack.c.b16 %v399, %v399
        %v416 = vpack.c.b16 %v400, %v400
        %v417 = vpack.c.b16 %v401, %v401
        %v418 = vpack.c.b16 %v402, %v402
        %v419 = vpack.c.b16 %v403, %v403
        %v420 = vpack.c.b16 %v404, %v404
        %v421 = vpack.c.b16 %v405, %v405
        %v422 = vpack.c.b16 %v406, %v406
        %v423 = vpack.c.b16 %v407, %v407
        %v424 = vpack.c.b16 %v408, %v408
        %v425 = vpack.c.b16 %v409, %v409
        %v426 = vpack.c.b16 %v410, %v410
        %443 = vst [vmem:[%s164] sm:$0xf] %v411
        %444 = vst [vmem:[%s164 + $0x4] sm:$0xf] %v412
        %445 = vst [vmem:[%s164 + $0x8] sm:$0xf] %v413
        %446 = vst [vmem:[%s164 + $0xc] sm:$0xf] %v414
        %447 = vst [vmem:[%s164 + $0x10] sm:$0xf] %v415
        %448 = vst [vmem:[%s164 + $0x14] sm:$0xf] %v416
        %449 = vst [vmem:[%s164 + $0x18] sm:$0xf] %v417
        %450 = vst [vmem:[%s164 + $0x1c] sm:$0xf] %v418
        %451 = vst [vmem:[%s164 + $0x20] sm:$0xf] %v419
        %452 = vst [vmem:[%s164 + $0x24] sm:$0xf] %v420
        %453 = vst [vmem:[%s164 + $0x28] sm:$0xf] %v421
        %454 = vst [vmem:[%s164 + $0x2c] sm:$0xf] %v422
        %455 = vst [vmem:[%s164 + $0x30] sm:$0xf] %v423
        %456 = vst [vmem:[%s164 + $0x34] sm:$0xf] %v424
        %457 = vst [vmem:[%s164 + $0x38] sm:$0xf] %v425
        %458 = vst [vmem:[%s164 + $0x3c] sm:$0xf] %v426
        %s459 = sand.u32 %s93, 1
        %s460 = scalar_lea.sflag [#allocation3], %s459
        %s461 = sand.u32 %s93, 1
        %s462 = smul.addr %s461, 64
        %s463 = scalar_lea.vmem [#allocation2], %s462
        // Predicated region
        $region33: #{tpu_custom_call.1} parent=31 // pred_check
          %p464 = pneg %p103
        $region34: #{tpu_custom_call.1} parent=31 // pred_check_branch
          %466 = sbr.rel (%p464) target = $region36
        $region35: #{tpu_custom_call.1} parent=31 // pred_region
          %s467 = smul.u32 16, %s17
          %s469 = ssub.s32 1024, 1024
          %470 = vsyncadd %s460, %s469
          %s471 = smul.addr %s467, 64
          %s472 = scalar_lea.hbm %s3, %s471
          %s473 = sshll.u32 %s463, 4
          %s474 = int_to_ptr.vmem [resolvable:$true] %s473
          %479 = dma.vmem_to_hbm [thread:$0]  %s474, 1024, %s472, %s460, 64, 64, 4
        $region36: #{tpu_custom_call.1} parent=31 // pred_fallthru
          _
      $region32: #{tpu_custom_call.1} parent=5 // pred_fallthru
        _
      %p480 = scmp.le.s32.totalorder 2, %s12
      // Predicated region
      $region37: #{tpu_custom_call.1} parent=5 // pred_check
        %p481 = pneg %p480
      $region38: #{tpu_custom_call.1} parent=5 // pred_check_branch
        %483 = sbr.rel (%p481) target = $region40
      $region39: #{tpu_custom_call.1} parent=5 // pred_region
        %s484 = ssub.s32 %s12, 2
        // Predicated region
        $region41: #{tpu_custom_call.1} parent=39 // pred_check
          %p485 = pneg %p109
        $region42: #{tpu_custom_call.1} parent=39 // pred_check_branch
          %487 = sbr.rel (%p485) target = $region44
        $region43: #{tpu_custom_call.1} parent=39 // pred_region
          %s488 = sand.u32 %s94, 1
          %s489 = scalar_lea.sflag [#allocation3], %s488
          %s490 = sand.u32 %s94, 1
          %s491 = smul.addr %s490, 64
          %s492 = scalar_lea.vmem [#allocation2], %s491
          %493 = dma.done %s489, 1024
        $region44: #{tpu_custom_call.1} parent=39 // pred_fallthru
          _
      $region40: #{tpu_custom_call.1} parent=5 // pred_fallthru
        _
    $region6: #{tpu_custom_call.1} parent=1 // loop_footer
      %s16 = sadd.s32 1, %s12
    $region7: #{tpu_custom_call.1} parent=1 // loop_footer_branch
      %11 = sbr.rel target = $region3
    $region8: #{tpu_custom_call.1} parent=1 // loop_exit
      _
    %494 = vsyncpa [#allocation3], 1
    %s495 = scalar_lea.sflag [#allocation3], 1
    %496 = vsyncpa %s495, 1

</llo_original>
